<compile_context>
chip_gen: v5e
topology: v5e:2x2
jax: 0.10.0
libtpu: 0.0.40
codegen_flags: <defaults>
</compile_context>

<pallas_src>
import functools

import jax
import jax.numpy as jnp
from jax import lax
from jax.experimental import pallas as pl
from jax.experimental.pallas import tpu as pltpu


def _device_kind():
    try:
        return jax.devices()[0].device_kind.lower()
    except Exception:
        return ""


def _default_block_bytes(kind):
    # v7x: ~3.2 TB/s HBM -> a 4 MiB block is only ~2.5us of DMA, so the fixed
    # ~0.35us/step grid overhead is >10% of each step; grow the block.
    # v5e: ~820 GB/s makes each 4 MiB block ~10us, overhead already <4% ->
    # don't grow (keeps the double-buffered footprint well under budget).
    if "7" in kind:
        return 8 << 20
    if "v6" in kind:
        return 6 << 20
    return 4 << 20


def _norm_kernel(x_ref, alpha_ref, bias_ref, o_ref, *, d_model, n_seg, eps,
                 lowp_second_pass):
    """Row-wise y = alpha*(x-mean)/(unbiased_std+eps)+bias over the last axis.

    NOTE: the block may be a ragged boundary block -- rows past the logical end
    of the array contain garbage.  All math below is row-local (lane reductions
    / per-row matmuls), so NaN/Inf in those rows stays in those rows and their
    stores are masked off by Pallas; they never reach HBM.
    """
    xf = x_ref[...].astype(jnp.float32)          # stats always accumulate in f32
    # torch unbiased std divides by N-1; max() guards d_model == 1 where torch
    # itself would produce NaN (intentional, documented deviation).
    inv_nm1 = 1.0 / max(d_model - 1, 1)

    if n_seg == 1:
        # Plain layout: one logical row per sublane row.
        mean_b = jnp.sum(xf, axis=-1, keepdims=True) * (1.0 / d_model)
        xc = xf - mean_b                          # centered two-pass variance
        var = jnp.sum(xc * xc, axis=-1, keepdims=True) * inv_nm1
    else:
        # Lane-dense packed layout: n_seg logical rows of width d_model share a
        # single 128-lane physical row.  Segment sums / broadcast-backs are done
        # with tiny selector matmuls on the otherwise-idle MXU (no relayouts,
        # no masked stores).  HIGHEST precision keeps f32 accuracy on the MXU.
        d_eff = n_seg * d_model
        hi = lax.Precision.HIGHEST
        lane = lax.broadcasted_iota(jnp.int32, (d_eff, n_seg), 0)
        seg = lax.broadcasted_iota(jnp.int32, (d_eff, n_seg), 1)
        S = ((lane >= seg * d_model) & (lane < (seg + 1) * d_model)
             ).astype(jnp.float32)                               # (d_eff, n_seg)
        lane_t = lax.broadcasted_iota(jnp.int32, (n_seg, d_eff), 1)
        seg_t = lax.broadcasted_iota(jnp.int32, (n_seg, d_eff), 0)
        S_T = ((lane_t >= seg_t * d_model) & (lane_t < (seg_t + 1) * d_model)
               ).astype(jnp.float32)                             # (n_seg, d_eff)

        s1 = jnp.dot(xf, S, precision=hi,
                     preferred_element_type=jnp.float32)         # (rows, n_seg)
        mean = s1 * (1.0 / d_model)
        mean_b = jnp.dot(mean, S_T, precision=hi,
                         preferred_element_type=jnp.float32)     # (rows, d_eff)
        xc = xf - mean_b
        var = jnp.dot(xc * xc, S, precision=hi,
                      preferred_element_type=jnp.float32) * inv_nm1

    var = jnp.maximum(var, 0.0)                  # clamp tiny fp negatives
    r = jnp.sqrt(var) + eps
    # Per-row reciprocal on the EUP (approx) + one Newton step back to full f32
    # precision; replaces a (rows x lanes) divide on the VPU.
    inv = pl.reciprocal(r, approx=True)
    inv = inv * (2.0 - r * inv)
    if n_seg == 1:
        inv_b = inv
    else:
        inv_b = jnp.dot(inv, S_T, precision=lax.Precision.HIGHEST,
                        preferred_element_type=jnp.float32)

    if lowp_second_pass:
        # v6e/v7x bf16 VALU: do the normalize pass in the input precision to
        # halve per-element VPU work and vreg footprint.  Stats above stay f32.
        lp = x_ref.dtype
        y = (x_ref[...] - mean_b.astype(lp)) * inv_b.astype(lp)
        y = y * alpha_ref[...].astype(lp) + bias_ref[...].astype(lp)
    else:
        y = (xc * inv_b * alpha_ref[...].astype(jnp.float32)
             + bias_ref[...].astype(jnp.float32))
    o_ref[...] = y.astype(o_ref.dtype)


def norm_forward(x, alpha, bias, eps=1e-6, vmem_block_bytes=None):
    """alpha * (x - mean) / (unbiased_std + eps) + bias over the last axis."""
    orig_shape = x.shape
    d_model = orig_shape[-1]
    rows = 1
    for s in orig_shape[:-1]:
        rows *= s

    out_dtype = jnp.result_type(x.dtype, alpha.dtype, bias.dtype)
    x2 = x.reshape(rows, d_model)
    alpha2 = alpha.reshape(1, d_model)
    bias2 = bias.reshape(1, d_model)

    # ---- lane-dense packing for narrow d_model (avoid masked vst.msk) -------
    # Pack k = 128 // d_model logical rows into one 128-lane physical row; the
    # (rows, d) -> (rows/k, k*d) reshape is row-major layout-preserving, so it
    # costs no HBM traffic.  Fall back to the plain path if rows isn't a
    # multiple of k (avoids re-introducing a pad).
    n_seg = 1
    if d_model < 128 and 128 % d_model == 0:
        k = 128 // d_model
        if rows >= k and rows % k == 0:
            n_seg = k
    d_eff = n_seg * d_model
    rows_eff = rows // n_seg
    if n_seg > 1:
        x2 = x2.reshape(rows_eff, d_eff)
        alpha2 = jnp.tile(alpha2, (1, n_seg))
        bias2 = jnp.tile(bias2, (1, n_seg))

    kind = _device_kind()
    if vmem_block_bytes is None:
        vmem_block_bytes = _default_block_bytes(kind)

    # bf16/f16 normalize pass only where the VPU has native 16-bit lanes
    # (v6e / v7x); keep the all-f32 second pass on v5e and older.
    lowp = (jnp.issubdtype(x.dtype, jnp.floating)
            and jnp.dtype(x.dtype).itemsize == 2
            and not any(g in kind for g in ("v2", "v3", "v4", "v5")))

    # ---- tile sizing: biggest row tile within the block budget ---------------
    itemsize = jnp.dtype(x.dtype).itemsize
    row_align = max(8, 32 // itemsize)           # (8,128) f32 / (16,128) bf16 tiles
    row_bytes = max(d_eff * itemsize, 1)
    budget_rows = max(row_align,
                      (vmem_block_bytes // row_bytes) // row_align * row_align)
    if rows_eff <= budget_rows:
        # Whole array fits one block; exact row count is always a legal block dim.
        tile_rows = rows_eff
    else:
        # Multi-block: tile_rows is 8/16-aligned; a ragged last block (when
        # rows_eff % tile_rows != 0) is masked by Pallas, so there is NO
        # jnp.pad(...) / out[:rows] HBM round trip anymore.
        tile_rows = budget_rows
    grid_rows = pl.cdiv(rows_eff, tile_rows)

    # VMEM limit derived from the actual double-buffered blocks (+ ~4 MiB slack)
    # instead of a flat 48 MiB; capped under v7x's 64 MiB per-TC VMEM, floored
    # at 16 MiB so v5e's small scoped default never bites.
    out_itemsize = jnp.dtype(out_dtype).itemsize
    blk_in = tile_rows * d_eff * itemsize
    blk_out = tile_rows * d_eff * out_itemsize
    params_b = 2 * d_eff * (jnp.dtype(alpha.dtype).itemsize
                            + jnp.dtype(bias.dtype).itemsize)
    vmem_limit = int(min(max(2 * (blk_in + blk_out) + params_b + (4 << 20),
                             16 << 20), 52 << 20))

    kernel = functools.partial(_norm_kernel, d_model=d_model, n_seg=n_seg,
                               eps=float(eps), lowp_second_pass=lowp)

    # TODO(synk): on v7x, benchmark dimension_semantics=(pltpu.CORE_PARALLEL,)
    # (or an explicit core_map split) to guarantee the row axis is divided
    # across the 2 TensorCores; "parallel" is the portable megacore hint.
    # TODO(synk): on v7x, sweep pipeline_mode=pl.Buffered(3) on the x BlockSpec
    # if xprof shows exposed DMA at step boundaries.
    out = pl.pallas_call(
        kernel,
        out_shape=jax.ShapeDtypeStruct((rows_eff, d_eff), out_dtype),
        grid_spec=pltpu.PrefetchScalarGridSpec(
            num_scalar_prefetch=0,
            grid=(grid_rows,),
            in_specs=[
                pl.BlockSpec((tile_rows, d_eff), lambda i: (i, 0)),
                pl.BlockSpec((1, d_eff), lambda i: (0, 0)),
                pl.BlockSpec((1, d_eff), lambda i: (0, 0)),
            ],
            out_specs=pl.BlockSpec((tile_rows, d_eff), lambda i: (i, 0)),
        ),
        compiler_params=pltpu.CompilerParams(
            dimension_semantics=("parallel",),
            vmem_limit_bytes=vmem_limit,
        ),
    )(x2, alpha2, bias2)

    return out.reshape(orig_shape)


if __name__ == "__main__":
    def reference(x, alpha, bias, eps):
        xf = x.astype(jnp.float32)
        d = xf.shape[-1]
        mean = jnp.mean(xf, axis=-1, keepdims=True)
        std = jnp.sqrt(jnp.sum((xf - mean) ** 2, axis=-1, keepdims=True)
                       / max(d - 1, 1))
        return (alpha.astype(jnp.float32) * (xf - mean) / (std + eps)
                + bias.astype(jnp.float32))

    key = jax.random.PRNGKey(0)
    k1, k1b, k2, k3, k4 = jax.random.split(key, 5)

    # Case 1: (batch, seq, d_model)=(2,8,32), with a DC offset -> exercises the
    # lane-dense packing path (k=4, single block) and centered-variance accuracy.
    x1 = jax.random.normal(k1, (2, 8, 32), dtype=jnp.float32) * 2.0 + 3.0
    a1 = jnp.ones((32,), jnp.float32)
    b1 = jnp.zeros((32,), jnp.float32)
    o1 = jax.block_until_ready(norm_forward(x1, a1, b1, eps=1e-6))
    assert jnp.allclose(o1, reference(x1, a1, b1, 1e-6),
                        atol=1e-4, rtol=1e-4), "mismatch (case 1)"

    # Case 1b: packed path with a multi-block grid and ragged last block
    # (tiny block budget forces grid > 1 without any HBM padding).
    x1b = jax.random.normal(k1b, (5, 8, 32), dtype=jnp.float32)
    o1b = jax.block_until_ready(
        norm_forward(x1b, a1, b1, eps=1e-6, vmem_block_bytes=4096))
    assert jnp.allclose(o1b, reference(x1b, a1, b1, 1e-6),
                        atol=1e-4, rtol=1e-4), "mismatch (case 1b)"

    # Case 2: rows=21 (odd), d_model=64 -> packing falls back, ragged boundary
    # block on the unpacked path, non-trivial alpha/bias.
    x2 = jax.random.normal(k2, (3, 7, 64), dtype=jnp.float32)
    a2 = jax.random.normal(jax.random.fold_in(k2, 1), (64,), dtype=jnp.float32)
    b2 = jax.random.normal(jax.random.fold_in(k2, 2), (64,), dtype=jnp.float32)
    o2 = jax.block_until_ready(
        norm_forward(x2, a2, b2, eps=1e-6, vmem_block_bytes=4096))
    assert jnp.allclose(o2, reference(x2, a2, b2, 1e-6),
                        atol=1e-4, rtol=1e-4), "mismatch (case 2)"

    # Case 3: lane-aligned d_model=128, multi-block grid with ragged last block.
    x3 = jax.random.normal(k3, (4, 16, 128), dtype=jnp.float32)
    a3 = jnp.full((128,), 0.5, jnp.float32)
    b3 = jnp.full((128,), 0.1, jnp.float32)
    o3 = jax.block_until_ready(
        norm_forward(x3, a3, b3, eps=1e-6, vmem_block_bytes=12288))
    assert jnp.allclose(o3, reference(x3, a3, b3, 1e-6),
                        atol=1e-4, rtol=1e-4), "mismatch (case 3)"

    # Case 4: bf16 input/params -> f32 stats + (on v6e/v7x) bf16 normalize pass.
    x4 = jax.random.normal(k4, (2, 8, 256), dtype=jnp.float32).astype(jnp.bfloat16)
    a4 = jnp.ones((256,), jnp.bfloat16)
    b4 = jnp.zeros((256,), jnp.bfloat16)
    o4 = jax.block_until_ready(norm_forward(x4, a4, b4, eps=1e-6))
    assert jnp.allclose(o4.astype(jnp.float32), reference(x4, a4, b4, 1e-6),
                        atol=6e-2, rtol=6e-2), "mismatch (case 4)"

    print("KERNEL_OK")
</pallas_src>

<mosaic_0001>
module attributes {stable_mosaic.version = 11 : i64} {
  func.func @_norm_kernel(%arg0: i32, %arg1: memref<4x128xf32, #tpu.memory_space<vmem>>, %arg2: memref<1x128xf32, #tpu.memory_space<vmem>>, %arg3: memref<1x128xf32, #tpu.memory_space<vmem>>, %arg4: memref<4x128xf32, #tpu.memory_space<vmem>>) attributes {dimension_semantics = [#tpu.dimension_semantics<parallel>], iteration_bounds = array<i64: 1>, scalar_prefetch = 0 : i64, scratch_operands = 0 : i64, tpu.core_type = #tpu.core_type<tc>, window_params = [{transform_indices = @transform_0, window_bounds = array<i64: 4, 128>}, {pipeline_mode = #tpu.pipeline_mode<synchronous>, transform_indices = @transform_1, window_bounds = array<i64: 1, 128>}, {pipeline_mode = #tpu.pipeline_mode<synchronous>, transform_indices = @transform_2, window_bounds = array<i64: 1, 128>}, {transform_indices = @transform_3, window_bounds = array<i64: 4, 128>}]} {
    %c0 = arith.constant 0 : index
    %c0_0 = arith.constant 0 : index
    %0 = vector.load %arg1[%c0, %c0_0] : memref<4x128xf32, #tpu.memory_space<vmem>>, vector<4x128xf32>
    %1 = tpu.iota {dimensions = array<i32: 0>} : vector<128x4xi32>
    %2 = tpu.iota {dimensions = array<i32: 1>} : vector<128x4xi32>
    %c32_i32 = arith.constant 32 : i32
    %3 = vector.broadcast %c32_i32 : i32 to vector<128x4xi32>
    %4 = arith.muli %2, %3 : vector<128x4xi32>
    %5 = arith.cmpi sge, %1, %4 : vector<128x4xi32>
    %c1_i32 = arith.constant 1 : i32
    %6 = vector.broadcast %c1_i32 : i32 to vector<128x4xi32>
    %7 = arith.addi %2, %6 : vector<128x4xi32>
    %c32_i32_1 = arith.constant 32 : i32
    %8 = vector.broadcast %c32_i32_1 : i32 to vector<128x4xi32>
    %9 = arith.muli %7, %8 : vector<128x4xi32>
    %10 = arith.cmpi slt, %1, %9 : vector<128x4xi32>
    %11 = arith.andi %5, %10 : vector<128x4xi1>
    %12 = arith.extui %11 : vector<128x4xi1> to vector<128x4xi32>
    %13 = arith.sitofp %12 : vector<128x4xi32> to vector<128x4xf32>
    %14 = tpu.iota {dimensions = array<i32: 1>} : vector<4x128xi32>
    %15 = tpu.iota {dimensions = array<i32: 0>} : vector<4x128xi32>
    %c32_i32_2 = arith.constant 32 : i32
    %16 = vector.broadcast %c32_i32_2 : i32 to vector<4x128xi32>
    %17 = arith.muli %15, %16 : vector<4x128xi32>
    %18 = arith.cmpi sge, %14, %17 : vector<4x128xi32>
    %c1_i32_3 = arith.constant 1 : i32
    %19 = vector.broadcast %c1_i32_3 : i32 to vector<4x128xi32>
    %20 = arith.addi %15, %19 : vector<4x128xi32>
    %c32_i32_4 = arith.constant 32 : i32
    %21 = vector.broadcast %c32_i32_4 : i32 to vector<4x128xi32>
    %22 = arith.muli %20, %21 : vector<4x128xi32>
    %23 = arith.cmpi slt, %14, %22 : vector<4x128xi32>
    %24 = arith.andi %18, %23 : vector<4x128xi1>
    %25 = arith.extui %24 : vector<4x128xi1> to vector<4x128xi32>
    %26 = arith.sitofp %25 : vector<4x128xi32> to vector<4x128xf32>
    %cst = arith.constant dense<0.000000e+00> : vector<4x4xf32>
    %27 = tpu.matmul %0, %13, %cst {dimension_numbers = #tpu.dot_dimension_numbers<[1], [0], [0], [1], [0, 0, 1, 1], [], []>, precision = #tpu.contract_precision<fp32>} : vector<4x128xf32>, vector<128x4xf32>, vector<4x4xf32> -> vector<4x4xf32>
    %cst_5 = arith.constant 3.125000e-02 : f32
    %28 = vector.broadcast %cst_5 : f32 to vector<4x4xf32>
    %29 = arith.mulf %27, %28 : vector<4x4xf32>
    %cst_6 = arith.constant dense<0.000000e+00> : vector<4x128xf32>
    %30 = tpu.matmul %29, %26, %cst_6 {dimension_numbers = #tpu.dot_dimension_numbers<[1], [0], [0], [1], [0, 0, 1, 1], [], []>, precision = #tpu.contract_precision<fp32>} : vector<4x4xf32>, vector<4x128xf32>, vector<4x128xf32> -> vector<4x128xf32>
    %31 = arith.subf %0, %30 : vector<4x128xf32>
    %32 = arith.mulf %31, %31 : vector<4x128xf32>
    %cst_7 = arith.constant dense<0.000000e+00> : vector<4x4xf32>
    %33 = tpu.matmul %32, %13, %cst_7 {dimension_numbers = #tpu.dot_dimension_numbers<[1], [0], [0], [1], [0, 0, 1, 1], [], []>, precision = #tpu.contract_precision<fp32>} : vector<4x128xf32>, vector<128x4xf32>, vector<4x4xf32> -> vector<4x4xf32>
    %cst_8 = arith.constant 0.0322580636 : f32
    %34 = vector.broadcast %cst_8 : f32 to vector<4x4xf32>
    %35 = arith.mulf %33, %34 : vector<4x4xf32>
    %cst_9 = arith.constant 0.000000e+00 : f32
    %36 = vector.broadcast %cst_9 : f32 to vector<4x4xf32>
    %37 = arith.maximumf %35, %36 : vector<4x4xf32>
    %38 = math.sqrt %37 : vector<4x4xf32>
    %cst_10 = arith.constant 9.99999997E-7 : f32
    %39 = vector.broadcast %cst_10 : f32 to vector<4x4xf32>
    %40 = arith.addf %38, %39 : vector<4x4xf32>
    %41 = tpu.reciprocal %40 {approx = true} : vector<4x4xf32> -> vector<4x4xf32>
    %42 = arith.mulf %40, %41 : vector<4x4xf32>
    %cst_11 = arith.constant 2.000000e+00 : f32
    %43 = vector.broadcast %cst_11 : f32 to vector<4x4xf32>
    %44 = arith.subf %43, %42 : vector<4x4xf32>
    %45 = arith.mulf %41, %44 : vector<4x4xf32>
    %cst_12 = arith.constant dense<0.000000e+00> : vector<4x128xf32>
    %46 = tpu.matmul %45, %26, %cst_12 {dimension_numbers = #tpu.dot_dimension_numbers<[1], [0], [0], [1], [0, 0, 1, 1], [], []>, precision = #tpu.contract_precision<fp32>} : vector<4x4xf32>, vector<4x128xf32>, vector<4x128xf32> -> vector<4x128xf32>
    %47 = arith.mulf %31, %46 : vector<4x128xf32>
    %c0_13 = arith.constant 0 : index
    %c0_14 = arith.constant 0 : index
    %48 = vector.load %arg2[%c0_13, %c0_14] : memref<1x128xf32, #tpu.memory_space<vmem>>, vector<1x128xf32>
    %49 = vector.broadcast %48 : vector<1x128xf32> to vector<4x128xf32>
    %50 = arith.mulf %47, %49 : vector<4x128xf32>
    %c0_15 = arith.constant 0 : index
    %c0_16 = arith.constant 0 : index
    %51 = vector.load %arg3[%c0_15, %c0_16] : memref<1x128xf32, #tpu.memory_space<vmem>>, vector<1x128xf32>
    %52 = vector.broadcast %51 : vector<1x128xf32> to vector<4x128xf32>
    %53 = arith.addf %50, %52 : vector<4x128xf32>
    %c0_17 = arith.constant 0 : index
    %c0_18 = arith.constant 0 : index
    %54 = vector.load %arg4[%c0_17, %c0_18] : memref<4x128xf32, #tpu.memory_space<vmem>>, vector<4x128xf32>
    tpu.vector_store %arg4[%c0_17, %c0_18], %53 {strides = array<i32>} : memref<4x128xf32, #tpu.memory_space<vmem>>, vector<4x128xf32>,
    return
  }
  func.func @transform_0(%arg0: i32) -> (i32, i32) {
    %c0_i32 = arith.constant 0 : i32
    %c0_i32_0 = arith.constant 0 : i32
    return %arg0, %c0_i32 : i32, i32
  }
  func.func @transform_1(%arg0: i32) -> (i32, i32) {
    %c0_i32 = arith.constant 0 : i32
    %c0_i32_0 = arith.constant 0 : i32
    %c0_i32_1 = arith.constant 0 : i32
    return %c0_i32, %c0_i32_0 : i32, i32
  }
  func.func @transform_2(%arg0: i32) -> (i32, i32) {
    %c0_i32 = arith.constant 0 : i32
    %c0_i32_0 = arith.constant 0 : i32
    %c0_i32_1 = arith.constant 0 : i32
    return %c0_i32, %c0_i32_0 : i32, i32
  }
  func.func @transform_3(%arg0: i32) -> (i32, i32) {
    %c0_i32 = arith.constant 0 : i32
    %c0_i32_0 = arith.constant 0 : i32
    return %arg0, %c0_i32 : i32, i32
  }
}

</mosaic_0001>

<llo_original>
// kernel: tpu_custom_call.1
$region0: #{tpu_custom_call.1}
  #allocation0 [shape = 'u32[]', space=smem, size = 0x4, offset = 0x4, fixed_abs, tag = 'smem constant byte address 0x4 - core index']
  #allocation1 [shape = 'u32[72,128]{1,0:T(1,128)}', space=vmem, size = 0x9000, scoped, tag = 'internal scratch']
  %s0 = inlined_call_operand.hbm [shape: f32[4,128], index: 0, kind: input, shape index: {}]
  %s1 = inlined_call_operand.hbm [shape: f32[1,128], index: 1, kind: input, shape index: {}]
  %s2 = inlined_call_operand.vmem [shape: f32[1,128], index: 2, kind: input, shape index: {}]
  %s3 = inlined_call_operand.hbm [shape: f32[4,128], index: 3, kind: output, shape index: {}]
  %s4 = sld [smem:[#allocation0]]
  $region30: #{tpu_custom_call.1} parent=0
    _
  %s6 = ssub.s32 1, %s4
  %s7 = scalar_select 0, %s6, %s4
  $region1: #{tpu_custom_call.1} parent=0
    #allocation2 [shape = 'u8[2048]{0}', space=vmem, size = 0x800, scoped, tag = 'input window, operand 0, single buffered']
    #allocation3 [shape = 's32[1]{0}', space=sflag, size = 0x4, scoped, tag = 'scoped memory for tpu_custom_call.1']
    #allocation4 [shape = 's32[1]{0}', space=sflag, size = 0x4, scoped, tag = 'scoped memory for tpu_custom_call.1']
    #allocation5 [shape = 'u8[512]{0}', space=vmem, size = 0x400, scoped, tag = 'input window, operand 1, single buffered']
    #allocation6 [shape = 's32[1]{0}', space=sflag, size = 0x4, scoped, tag = 'scoped memory for tpu_custom_call.1']
    #allocation7 [shape = 'u8[2048]{0}', space=vmem, size = 0x800, scoped, tag = 'output window, operand 0, single buffered']
    %8 = vsyncpa [#allocation3], 0
    %9 = vsyncpa [#allocation6], 0
    %10 = vsyncpa [#allocation4], 0
    // Predicated region
    $region2: #{tpu_custom_call.1} parent=1 // pred_check
      _
    $region3: #{tpu_custom_call.1} parent=1 // pred_check_branch
      %12 = sbr.rel (0) target = $region5
    $region4: #{tpu_custom_call.1} parent=1 // pred_region
      %14 = vsyncadd [#allocation3], 0
      %s16 = sshll.u32 %s0, 4
      %s17 = int_to_ptr.hbm [resolvable:$true] %s16
      %s18 = sshll.u32 [#allocation2], 4
      %s19 = int_to_ptr.vmem [resolvable:$true] %s18
      %21 = dma.hbm_to_vmem [thread:$0]  %s17, 64, %s19, [#allocation3]
    $region5: #{tpu_custom_call.1} parent=1 // pred_fallthru
      _
    // Predicated region
    $region6: #{tpu_custom_call.1} parent=1 // pred_check
      _
    $region7: #{tpu_custom_call.1} parent=1 // pred_check_branch
      %23 = sbr.rel (0) target = $region9
    $region8: #{tpu_custom_call.1} parent=1 // pred_region
      %25 = vsyncadd [#allocation6], 0
      %s27 = sshll.u32 %s1, 4
      %s28 = int_to_ptr.hbm [resolvable:$true] %s27
      %s29 = sshll.u32 [#allocation5], 4
      %s30 = int_to_ptr.vmem [resolvable:$true] %s29
      %32 = dma.hbm_to_vmem [thread:$0]  %s28, 16, %s30, [#allocation6]
    $region9: #{tpu_custom_call.1} parent=1 // pred_fallthru
      _
    // Predicated region
    $region10: #{tpu_custom_call.1} parent=1 // pred_check
      _
    $region11: #{tpu_custom_call.1} parent=1 // pred_check_branch
      %34 = sbr.rel (0) target = $region13
    $region12: #{tpu_custom_call.1} parent=1 // pred_region
      _
    $region13: #{tpu_custom_call.1} parent=1 // pred_fallthru
      _
    // Predicated region
    $region14: #{tpu_custom_call.1} parent=1 // pred_check
      _
    $region15: #{tpu_custom_call.1} parent=1 // pred_check_branch
      %36 = sbr.rel (0) target = $region17
    $region16: #{tpu_custom_call.1} parent=1 // pred_region
      %38 = dma.done [#allocation3], 64
    $region17: #{tpu_custom_call.1} parent=1 // pred_fallthru
      _
    // Predicated region
    $region18: #{tpu_custom_call.1} parent=1 // pred_check
      _
    $region19: #{tpu_custom_call.1} parent=1 // pred_check_branch
      %40 = sbr.rel (0) target = $region21
    $region20: #{tpu_custom_call.1} parent=1 // pred_region
      %42 = dma.done [#allocation6], 16
    $region21: #{tpu_custom_call.1} parent=1 // pred_fallthru
      _
    %v43 = vld [vmem:[#allocation2] sm:$0xf]
    %v44 = vlaneseq
    %v45 = vshrl.u32 %v44, 7
    %v46 = vadd.s32 %v45, 8
    %v47 = vadd.s32 %v45, 16
    %v48 = vadd.s32 %v45, 24
    %v49 = vadd.s32 %v45, 32
    %v50 = vadd.s32 %v45, 40
    %v51 = vadd.s32 %v45, 48
    %v52 = vadd.s32 %v45, 56
    %v53 = vadd.s32 %v45, 64
    %v54 = vadd.s32 %v45, 72
    %v55 = vadd.s32 %v45, 80
    %v56 = vadd.s32 %v45, 88
    %v57 = vadd.s32 %v45, 96
    %v58 = vadd.s32 %v45, 104
    %v59 = vadd.s32 %v45, 112
    %v60 = vadd.s32 %v45, 120
    %v61 = vlaneseq
    %v62 = vand.u32 %v61, 127
    %v63 = vmul.u32 %v62, 32
    %vm64 = vcmp.ge.s32.totalorder %v45, %v63
    %vm65 = vcmp.ge.s32.totalorder %v46, %v63
    %vm66 = vcmp.ge.s32.totalorder %v47, %v63
    %vm67 = vcmp.ge.s32.totalorder %v48, %v63
    %vm68 = vcmp.ge.s32.totalorder %v49, %v63
    %vm69 = vcmp.ge.s32.totalorder %v50, %v63
    %vm70 = vcmp.ge.s32.totalorder %v51, %v63
    %vm71 = vcmp.ge.s32.totalorder %v52, %v63
    %vm72 = vcmp.ge.s32.totalorder %v53, %v63
    %vm73 = vcmp.ge.s32.totalorder %v54, %v63
    %vm74 = vcmp.ge.s32.totalorder %v55, %v63
    %vm75 = vcmp.ge.s32.totalorder %v56, %v63
    %vm76 = vcmp.ge.s32.totalorder %v57, %v63
    %vm77 = vcmp.ge.s32.totalorder %v58, %v63
    %vm78 = vcmp.ge.s32.totalorder %v59, %v63
    %vm79 = vcmp.ge.s32.totalorder %v60, %v63
    %v80 = vadd.s32 %v62, 1
    %v81 = vmul.u32 %v80, 32
    %vm82 = vcmp.lt.s32.totalorder %v45, %v81
    %vm83 = vcmp.lt.s32.totalorder %v46, %v81
    %vm84 = vcmp.lt.s32.totalorder %v47, %v81
    %vm85 = vcmp.lt.s32.totalorder %v48, %v81
    %vm86 = vcmp.lt.s32.totalorder %v49, %v81
    %vm87 = vcmp.lt.s32.totalorder %v50, %v81
    %vm88 = vcmp.lt.s32.totalorder %v51, %v81
    %vm89 = vcmp.lt.s32.totalorder %v52, %v81
    %vm90 = vcmp.lt.s32.totalorder %v53, %v81
    %vm91 = vcmp.lt.s32.totalorder %v54, %v81
    %vm92 = vcmp.lt.s32.totalorder %v55, %v81
    %vm93 = vcmp.lt.s32.totalorder %v56, %v81
    %vm94 = vcmp.lt.s32.totalorder %v57, %v81
    %vm95 = vcmp.lt.s32.totalorder %v58, %v81
    %vm96 = vcmp.lt.s32.totalorder %v59, %v81
    %vm97 = vcmp.lt.s32.totalorder %v60, %v81
    %vm98 = vmand %vm64, %vm82
    %vm99 = vmand %vm65, %vm83
    %vm100 = vmand %vm66, %vm84
    %vm101 = vmand %vm67, %vm85
    %vm102 = vmand %vm68, %vm86
    %vm103 = vmand %vm69, %vm87
    %vm104 = vmand %vm70, %vm88
    %vm105 = vmand %vm71, %vm89
    %vm106 = vmand %vm72, %vm90
    %vm107 = vmand %vm73, %vm91
    %vm108 = vmand %vm74, %vm92
    %vm109 = vmand %vm75, %vm93
    %vm110 = vmand %vm76, %vm94
    %vm111 = vmand %vm77, %vm95
    %vm112 = vmand %vm78, %vm96
    %vm113 = vmand %vm79, %vm97
    %v114 = vsel %vm98, 1, 0
    %v115 = vsel %vm99, 1, 0
    %v116 = vsel %vm100, 1, 0
    %v117 = vsel %vm101, 1, 0
    %v118 = vsel %vm102, 1, 0
    %v119 = vsel %vm103, 1, 0
    %v120 = vsel %vm104, 1, 0
    %v121 = vsel %vm105, 1, 0
    %v122 = vsel %vm106, 1, 0
    %v123 = vsel %vm107, 1, 0
    %v124 = vsel %vm108, 1, 0
    %v125 = vsel %vm109, 1, 0
    %v126 = vsel %vm110, 1, 0
    %v127 = vsel %vm111, 1, 0
    %v128 = vsel %vm112, 1, 0
    %v129 = vsel %vm113, 1, 0
    %v130 = vcvt.s32.f32 %v114
    %v131 = vcvt.s32.f32 %v115
    %v132 = vcvt.s32.f32 %v116
    %v133 = vcvt.s32.f32 %v117
    %v134 = vcvt.s32.f32 %v118
    %v135 = vcvt.s32.f32 %v119
    %v136 = vcvt.s32.f32 %v120
    %v137 = vcvt.s32.f32 %v121
    %v138 = vcvt.s32.f32 %v122
    %v139 = vcvt.s32.f32 %v123
    %v140 = vcvt.s32.f32 %v124
    %v141 = vcvt.s32.f32 %v125
    %v142 = vcvt.s32.f32 %v126
    %v143 = vcvt.s32.f32 %v127
    %v144 = vcvt.s32.f32 %v128
    %v145 = vcvt.s32.f32 %v129
    %v146 = vmul.u32 %v45, 32
    %vm147 = vcmp.ge.s32.totalorder %v62, %v146
    %v148 = vadd.s32 %v45, 1
    %v149 = vmul.u32 %v148, 32
    %vm150 = vcmp.lt.s32.totalorder %v62, %v149
    %vm151 = vmand %vm147, %vm150
    %v152 = vsel %vm151, 1, 0
    %v153 = vcvt.s32.f32 %v152
    %v154 = vand.u32 %v145, 4294901760
    %155 = vmatpush.msra.mxu0 %v154
    %v156 = vand.u32 %v144, 4294901760
    %157 = vmatpush.msra.mxu0 %v156
    %v158 = vand.u32 %v143, 4294901760
    %159 = vmatpush.msra.mxu0 %v158
    %v160 = vand.u32 %v142, 4294901760
    %161 = vmatpush.msra.mxu0 %v160
    %v162 = vand.u32 %v141, 4294901760
    %163 = vmatpush.msra.mxu0 %v162
    %v164 = vand.u32 %v140, 4294901760
    %165 = vmatpush.msra.mxu0 %v164
    %v166 = vand.u32 %v139, 4294901760
    %167 = vmatpush.msra.mxu0 %v166
    %v168 = vand.u32 %v138, 4294901760
    %169 = vmatpush.msra.mxu0 %v168
    %v170 = vand.u32 %v137, 4294901760
    %171 = vmatpush.msra.mxu0 %v170
    %v172 = vand.u32 %v136, 4294901760
    %173 = vmatpush.msra.mxu0 %v172
    %v174 = vand.u32 %v135, 4294901760
    %175 = vmatpush.msra.mxu0 %v174
    %v176 = vand.u32 %v134, 4294901760
    %177 = vmatpush.msra.mxu0 %v176
    %v178 = vand.u32 %v133, 4294901760
    %179 = vmatpush.msra.mxu0 %v178
    %v180 = vand.u32 %v132, 4294901760
    %181 = vmatpush.msra.mxu0 %v180
    %v182 = vand.u32 %v131, 4294901760
    %183 = vmatpush.msra.mxu0 %v182
    %v184 = vand.u32 %v130, 4294901760
    %185 = vmatpush.msra.mxu0 %v184
    %v186 = vand.u32 %v43, 4294901760
    %v187 = vsub.f32 %v43, %v186
    %v188 = vand.u32 %v187, 4294901760
    %v189 = vsub.f32 %v187, %v188
    %v190 = vand.u32 %v189, 4294901760
    %191 = vmatmul.f32.gmra.mxu0 %v190
    %v192 = vpop.f32.mrf.mxu0
    %v193 = vadd.f32 0.0, %v192
    %194 = vdwg.mxu0
    %v195 = vand.u32 %v145, 4294901760
    %v196 = vsub.f32 %v145, %v195
    %v197 = vand.u32 %v196, 4294901760
    %v198 = vsub.f32 %v196, %v197
    %v199 = vand.u32 %v198, 4294901760
    %200 = vmatpush.msra.mxu0 %v199
    %v201 = vand.u32 %v144, 4294901760
    %v202 = vsub.f32 %v144, %v201
    %v203 = vand.u32 %v202, 4294901760
    %v204 = vsub.f32 %v202, %v203
    %v205 = vand.u32 %v204, 4294901760
    %206 = vmatpush.msra.mxu0 %v205
    %v207 = vand.u32 %v143, 4294901760
    %v208 = vsub.f32 %v143, %v207
    %v209 = vand.u32 %v208, 4294901760
    %v210 = vsub.f32 %v208, %v209
    %v211 = vand.u32 %v210, 4294901760
    %212 = vmatpush.msra.mxu0 %v211
    %v213 = vand.u32 %v142, 4294901760
    %v214 = vsub.f32 %v142, %v213
    %v215 = vand.u32 %v214, 4294901760
    %v216 = vsub.f32 %v214, %v215
    %v217 = vand.u32 %v216, 4294901760
    %218 = vmatpush.msra.mxu0 %v217
    %v219 = vand.u32 %v141, 4294901760
    %v220 = vsub.f32 %v141, %v219
    %v221 = vand.u32 %v220, 4294901760
    %v222 = vsub.f32 %v220, %v221
    %v223 = vand.u32 %v222, 4294901760
    %224 = vmatpush.msra.mxu0 %v223
    %v225 = vand.u32 %v140, 4294901760
    %v226 = vsub.f32 %v140, %v225
    %v227 = vand.u32 %v226, 4294901760
    %v228 = vsub.f32 %v226, %v227
    %v229 = vand.u32 %v228, 4294901760
    %230 = vmatpush.msra.mxu0 %v229
    %v231 = vand.u32 %v139, 4294901760
    %v232 = vsub.f32 %v139, %v231
    %v233 = vand.u32 %v232, 4294901760
    %v234 = vsub.f32 %v232, %v233
    %v235 = vand.u32 %v234, 4294901760
    %236 = vmatpush.msra.mxu0 %v235
    %v237 = vand.u32 %v138, 4294901760
    %v238 = vsub.f32 %v138, %v237
    %v239 = vand.u32 %v238, 4294901760
    %v240 = vsub.f32 %v238, %v239
    %v241 = vand.u32 %v240, 4294901760
    %242 = vmatpush.msra.mxu0 %v241
    %v243 = vand.u32 %v137, 4294901760
    %v244 = vsub.f32 %v137, %v243
    %v245 = vand.u32 %v244, 4294901760
    %v246 = vsub.f32 %v244, %v245
    %v247 = vand.u32 %v246, 4294901760
    %248 = vmatpush.msra.mxu0 %v247
    %v249 = vand.u32 %v136, 4294901760
    %v250 = vsub.f32 %v136, %v249
    %v251 = vand.u32 %v250, 4294901760
    %v252 = vsub.f32 %v250, %v251
    %v253 = vand.u32 %v252, 4294901760
    %254 = vmatpush.msra.mxu0 %v253
    %v255 = vand.u32 %v135, 4294901760
    %v256 = vsub.f32 %v135, %v255
    %v257 = vand.u32 %v256, 4294901760
    %v258 = vsub.f32 %v256, %v257
    %v259 = vand.u32 %v258, 4294901760
    %260 = vmatpush.msra.mxu0 %v259
    %v261 = vand.u32 %v134, 4294901760
    %v262 = vsub.f32 %v134, %v261
    %v263 = vand.u32 %v262, 4294901760
    %v264 = vsub.f32 %v262, %v263
    %v265 = vand.u32 %v264, 4294901760
    %266 = vmatpush.msra.mxu0 %v265
    %v267 = vand.u32 %v133, 4294901760
    %v268 = vsub.f32 %v133, %v267
    %v269 = vand.u32 %v268, 4294901760
    %v270 = vsub.f32 %v268, %v269
    %v271 = vand.u32 %v270, 4294901760
    %272 = vmatpush.msra.mxu0 %v271
    %v273 = vand.u32 %v132, 4294901760
    %v274 = vsub.f32 %v132, %v273
    %v275 = vand.u32 %v274, 4294901760
    %v276 = vsub.f32 %v274, %v275
    %v277 = vand.u32 %v276, 4294901760
    %278 = vmatpush.msra.mxu0 %v277
    %v279 = vand.u32 %v131, 4294901760
    %v280 = vsub.f32 %v131, %v279
    %v281 = vand.u32 %v280, 4294901760
    %v282 = vsub.f32 %v280, %v281
    %v283 = vand.u32 %v282, 4294901760
    %284 = vmatpush.msra.mxu0 %v283
    %v285 = vand.u32 %v130, 4294901760
    %v286 = vsub.f32 %v130, %v285
    %v287 = vand.u32 %v286, 4294901760
    %v288 = vsub.f32 %v286, %v287
    %v289 = vand.u32 %v288, 4294901760
    %290 = vmatpush.msra.mxu0 %v289
    %v291 = vand.u32 %v43, 4294901760
    %292 = vmatmul.f32.gmra.mxu0 %v291
    %v293 = vpop.f32.mrf.mxu0
    %v294 = vadd.f32 %v193, %v293
    %295 = vdwg.mxu0
    %v296 = vand.u32 %v145, 4294901760
    %v297 = vsub.f32 %v145, %v296
    %298 = vmatpush.msra.mxu0 %v297
    %v299 = vand.u32 %v144, 4294901760
    %v300 = vsub.f32 %v144, %v299
    %301 = vmatpush.msra.mxu0 %v300
    %v302 = vand.u32 %v143, 4294901760
    %v303 = vsub.f32 %v143, %v302
    %304 = vmatpush.msra.mxu0 %v303
    %v305 = vand.u32 %v142, 4294901760
    %v306 = vsub.f32 %v142, %v305
    %307 = vmatpush.msra.mxu0 %v306
    %v308 = vand.u32 %v141, 4294901760
    %v309 = vsub.f32 %v141, %v308
    %310 = vmatpush.msra.mxu0 %v309
    %v311 = vand.u32 %v140, 4294901760
    %v312 = vsub.f32 %v140, %v311
    %313 = vmatpush.msra.mxu0 %v312
    %v314 = vand.u32 %v139, 4294901760
    %v315 = vsub.f32 %v139, %v314
    %316 = vmatpush.msra.mxu0 %v315
    %v317 = vand.u32 %v138, 4294901760
    %v318 = vsub.f32 %v138, %v317
    %319 = vmatpush.msra.mxu0 %v318
    %v320 = vand.u32 %v137, 4294901760
    %v321 = vsub.f32 %v137, %v320
    %322 = vmatpush.msra.mxu0 %v321
    %v323 = vand.u32 %v136, 4294901760
    %v324 = vsub.f32 %v136, %v323
    %325 = vmatpush.msra.mxu0 %v324
    %v326 = vand.u32 %v135, 4294901760
    %v327 = vsub.f32 %v135, %v326
    %328 = vmatpush.msra.mxu0 %v327
    %v329 = vand.u32 %v134, 4294901760
    %v330 = vsub.f32 %v134, %v329
    %331 = vmatpush.msra.mxu0 %v330
    %v332 = vand.u32 %v133, 4294901760
    %v333 = vsub.f32 %v133, %v332
    %334 = vmatpush.msra.mxu0 %v333
    %v335 = vand.u32 %v132, 4294901760
    %v336 = vsub.f32 %v132, %v335
    %337 = vmatpush.msra.mxu0 %v336
    %v338 = vand.u32 %v131, 4294901760
    %v339 = vsub.f32 %v131, %v338
    %340 = vmatpush.msra.mxu0 %v339
    %v341 = vand.u32 %v130, 4294901760
    %v342 = vsub.f32 %v130, %v341
    %343 = vmatpush.msra.mxu0 %v342
    %v344 = vand.u32 %v43, 4294901760
    %v345 = vsub.f32 %v43, %v344
    %346 = vmatmul.f32.gmra.mxu0 %v345
    %v347 = vpop.f32.mrf.mxu0
    %v348 = vadd.f32 %v294, %v347
    %349 = vdwg.mxu0
    %v350 = vand.u32 %v145, 4294901760
    %351 = vmatpush.msra.mxu0 %v350
    %v352 = vand.u32 %v144, 4294901760
    %353 = vmatpush.msra.mxu0 %v352
    %v354 = vand.u32 %v143, 4294901760
    %355 = vmatpush.msra.mxu0 %v354
    %v356 = vand.u32 %v142, 4294901760
    %357 = vmatpush.msra.mxu0 %v356
    %v358 = vand.u32 %v141, 4294901760
    %359 = vmatpush.msra.mxu0 %v358
    %v360 = vand.u32 %v140, 4294901760
    %361 = vmatpush.msra.mxu0 %v360
    %v362 = vand.u32 %v139, 4294901760
    %363 = vmatpush.msra.mxu0 %v362
    %v364 = vand.u32 %v138, 4294901760
    %365 = vmatpush.msra.mxu0 %v364
    %v366 = vand.u32 %v137, 4294901760
    %367 = vmatpush.msra.mxu0 %v366
    %v368 = vand.u32 %v136, 4294901760
    %369 = vmatpush.msra.mxu0 %v368
    %v370 = vand.u32 %v135, 4294901760
    %371 = vmatpush.msra.mxu0 %v370
    %v372 = vand.u32 %v134, 4294901760
    %373 = vmatpush.msra.mxu0 %v372
    %v374 = vand.u32 %v133, 4294901760
    %375 = vmatpush.msra.mxu0 %v374
    %v376 = vand.u32 %v132, 4294901760
    %377 = vmatpush.msra.mxu0 %v376
    %v378 = vand.u32 %v131, 4294901760
    %379 = vmatpush.msra.mxu0 %v378
    %v380 = vand.u32 %v130, 4294901760
    %381 = vmatpush.msra.mxu0 %v380
    %v382 = vand.u32 %v43, 4294901760
    %v383 = vsub.f32 %v43, %v382
    %v384 = vand.u32 %v383, 4294901760
    %385 = vmatmul.f32.gmra.mxu0 %v384
    %v386 = vpop.f32.mrf.mxu0
    %v387 = vadd.f32 %v348, %v386
    %388 = vdwg.mxu0
    %v389 = vand.u32 %v145, 4294901760
    %v390 = vsub.f32 %v145, %v389
    %v391 = vand.u32 %v390, 4294901760
    %392 = vmatpush.msra.mxu0 %v391
    %v393 = vand.u32 %v144, 4294901760
    %v394 = vsub.f32 %v144, %v393
    %v395 = vand.u32 %v394, 4294901760
    %396 = vmatpush.msra.mxu0 %v395
    %v397 = vand.u32 %v143, 4294901760
    %v398 = vsub.f32 %v143, %v397
    %v399 = vand.u32 %v398, 4294901760
    %400 = vmatpush.msra.mxu0 %v399
    %v401 = vand.u32 %v142, 4294901760
    %v402 = vsub.f32 %v142, %v401
    %v403 = vand.u32 %v402, 4294901760
    %404 = vmatpush.msra.mxu0 %v403
    %v405 = vand.u32 %v141, 4294901760
    %v406 = vsub.f32 %v141, %v405
    %v407 = vand.u32 %v406, 4294901760
    %408 = vmatpush.msra.mxu0 %v407
    %v409 = vand.u32 %v140, 4294901760
    %v410 = vsub.f32 %v140, %v409
    %v411 = vand.u32 %v410, 4294901760
    %412 = vmatpush.msra.mxu0 %v411
    %v413 = vand.u32 %v139, 4294901760
    %v414 = vsub.f32 %v139, %v413
    %v415 = vand.u32 %v414, 4294901760
    %416 = vmatpush.msra.mxu0 %v415
    %v417 = vand.u32 %v138, 4294901760
    %v418 = vsub.f32 %v138, %v417
    %v419 = vand.u32 %v418, 4294901760
    %420 = vmatpush.msra.mxu0 %v419
    %v421 = vand.u32 %v137, 4294901760
    %v422 = vsub.f32 %v137, %v421
    %v423 = vand.u32 %v422, 4294901760
    %424 = vmatpush.msra.mxu0 %v423
    %v425 = vand.u32 %v136, 4294901760
    %v426 = vsub.f32 %v136, %v425
    %v427 = vand.u32 %v426, 4294901760
    %428 = vmatpush.msra.mxu0 %v427
    %v429 = vand.u32 %v135, 4294901760
    %v430 = vsub.f32 %v135, %v429
    %v431 = vand.u32 %v430, 4294901760
    %432 = vmatpush.msra.mxu0 %v431
    %v433 = vand.u32 %v134, 4294901760
    %v434 = vsub.f32 %v134, %v433
    %v435 = vand.u32 %v434, 4294901760
    %436 = vmatpush.msra.mxu0 %v435
    %v437 = vand.u32 %v133, 4294901760
    %v438 = vsub.f32 %v133, %v437
    %v439 = vand.u32 %v438, 4294901760
    %440 = vmatpush.msra.mxu0 %v439
    %v441 = vand.u32 %v132, 4294901760
    %v442 = vsub.f32 %v132, %v441
    %v443 = vand.u32 %v442, 4294901760
    %444 = vmatpush.msra.mxu0 %v443
    %v445 = vand.u32 %v131, 4294901760
    %v446 = vsub.f32 %v131, %v445
    %v447 = vand.u32 %v446, 4294901760
    %448 = vmatpush.msra.mxu0 %v447
    %v449 = vand.u32 %v130, 4294901760
    %v450 = vsub.f32 %v130, %v449
    %v451 = vand.u32 %v450, 4294901760
    %452 = vmatpush.msra.mxu0 %v451
    %v453 = vand.u32 %v43, 4294901760
    %454 = vmatmul.f32.gmra.mxu0 %v453
    %v455 = vpop.f32.mrf.mxu0
    %v456 = vadd.f32 %v387, %v455
    %457 = vdwg.mxu0
    %v458 = vand.u32 %v145, 4294901760
    %459 = vmatpush.msra.mxu0 %v458
    %v460 = vand.u32 %v144, 4294901760
    %461 = vmatpush.msra.mxu0 %v460
    %v462 = vand.u32 %v143, 4294901760
    %463 = vmatpush.msra.mxu0 %v462
    %v464 = vand.u32 %v142, 4294901760
    %465 = vmatpush.msra.mxu0 %v464
    %v466 = vand.u32 %v141, 4294901760
    %467 = vmatpush.msra.mxu0 %v466
    %v468 = vand.u32 %v140, 4294901760
    %469 = vmatpush.msra.mxu0 %v468
    %v470 = vand.u32 %v139, 4294901760
    %471 = vmatpush.msra.mxu0 %v470
    %v472 = vand.u32 %v138, 4294901760
    %473 = vmatpush.msra.mxu0 %v472
    %v474 = vand.u32 %v137, 4294901760
    %475 = vmatpush.msra.mxu0 %v474
    %v476 = vand.u32 %v136, 4294901760
    %477 = vmatpush.msra.mxu0 %v476
    %v478 = vand.u32 %v135, 4294901760
    %479 = vmatpush.msra.mxu0 %v478
    %v480 = vand.u32 %v134, 4294901760
    %481 = vmatpush.msra.mxu0 %v480
    %v482 = vand.u32 %v133, 4294901760
    %483 = vmatpush.msra.mxu0 %v482
    %v484 = vand.u32 %v132, 4294901760
    %485 = vmatpush.msra.mxu0 %v484
    %v486 = vand.u32 %v131, 4294901760
    %487 = vmatpush.msra.mxu0 %v486
    %v488 = vand.u32 %v130, 4294901760
    %489 = vmatpush.msra.mxu0 %v488
    %v490 = vand.u32 %v43, 4294901760
    %491 = vmatmul.f32.gmra.mxu0 %v490
    %v492 = vpop.f32.mrf.mxu0
    %v493 = vadd.f32 %v456, %v492
    %494 = vdwg.mxu0
    %v495 = vmul.f32 %v493, 0.03125
    %vm496 = vcmask 31744
    %v498 = vsel %vm496, %v495, 0
    %vm500 = vcmask 1043456
    %v502 = vsel %vm500, %v153, 0
    %504 = vmatpush.msra.mxu0 0.0
    %505 = vmatpush.msra.mxu0 0.0
    %506 = vmatpush.msra.mxu0 0.0
    %507 = vmatpush.msra.mxu0 0.0
    %508 = vmatpush.msra.mxu0 0.0
    %509 = vmatpush.msra.mxu0 0.0
    %510 = vmatpush.msra.mxu0 0.0
    %511 = vmatpush.msra.mxu0 0.0
    %512 = vmatpush.msra.mxu0 0.0
    %513 = vmatpush.msra.mxu0 0.0
    %514 = vmatpush.msra.mxu0 0.0
    %515 = vmatpush.msra.mxu0 0.0
    %516 = vmatpush.msra.mxu0 0.0
    %517 = vmatpush.msra.mxu0 0.0
    %518 = vmatpush.msra.mxu0 0.0
    %v519 = vand.u32 %v502, 4294901760
    %520 = vmatpush.msra.mxu0 %v519
    %v521 = vand.u32 %v498, 4294901760
    %v522 = vsub.f32 %v498, %v521
    %v523 = vand.u32 %v522, 4294901760
    %v524 = vsub.f32 %v522, %v523
    %v525 = vand.u32 %v524, 4294901760
    %526 = vmatmul.f32.gmra.mxu0 %v525
    %v527 = vpop.f32.mrf.mxu0
    %v528 = vadd.f32 0.0, %v527
    %529 = vdwg.mxu0
    %530 = vmatpush.msra.mxu0 0.0
    %531 = vmatpush.msra.mxu0 0.0
    %532 = vmatpush.msra.mxu0 0.0
    %533 = vmatpush.msra.mxu0 0.0
    %534 = vmatpush.msra.mxu0 0.0
    %535 = vmatpush.msra.mxu0 0.0
    %536 = vmatpush.msra.mxu0 0.0
    %537 = vmatpush.msra.mxu0 0.0
    %538 = vmatpush.msra.mxu0 0.0
    %539 = vmatpush.msra.mxu0 0.0
    %540 = vmatpush.msra.mxu0 0.0
    %541 = vmatpush.msra.mxu0 0.0
    %542 = vmatpush.msra.mxu0 0.0
    %543 = vmatpush.msra.mxu0 0.0
    %544 = vmatpush.msra.mxu0 0.0
    %v545 = vand.u32 %v502, 4294901760
    %v546 = vsub.f32 %v502, %v545
    %v547 = vand.u32 %v546, 4294901760
    %v548 = vsub.f32 %v546, %v547
    %v549 = vand.u32 %v548, 4294901760
    %550 = vmatpush.msra.mxu0 %v549
    %v551 = vand.u32 %v498, 4294901760
    %552 = vmatmul.f32.gmra.mxu0 %v551
    %v553 = vpop.f32.mrf.mxu0
    %v554 = vadd.f32 %v528, %v553
    %555 = vdwg.mxu0
    %556 = vmatpush.msra.mxu0 0.0
    %557 = vmatpush.msra.mxu0 0.0
    %558 = vmatpush.msra.mxu0 0.0
    %559 = vmatpush.msra.mxu0 0.0
    %560 = vmatpush.msra.mxu0 0.0
    %561 = vmatpush.msra.mxu0 0.0
    %562 = vmatpush.msra.mxu0 0.0
    %563 = vmatpush.msra.mxu0 0.0
    %564 = vmatpush.msra.mxu0 0.0
    %565 = vmatpush.msra.mxu0 0.0
    %566 = vmatpush.msra.mxu0 0.0
    %567 = vmatpush.msra.mxu0 0.0
    %568 = vmatpush.msra.mxu0 0.0
    %569 = vmatpush.msra.mxu0 0.0
    %570 = vmatpush.msra.mxu0 0.0
    %v571 = vand.u32 %v502, 4294901760
    %v572 = vsub.f32 %v502, %v571
    %573 = vmatpush.msra.mxu0 %v572
    %v574 = vand.u32 %v498, 4294901760
    %v575 = vsub.f32 %v498, %v574
    %576 = vmatmul.f32.gmra.mxu0 %v575
    %v577 = vpop.f32.mrf.mxu0
    %v578 = vadd.f32 %v554, %v577
    %579 = vdwg.mxu0
    %580 = vmatpush.msra.mxu0 0.0
    %581 = vmatpush.msra.mxu0 0.0
    %582 = vmatpush.msra.mxu0 0.0
    %583 = vmatpush.msra.mxu0 0.0
    %584 = vmatpush.msra.mxu0 0.0
    %585 = vmatpush.msra.mxu0 0.0
    %586 = vmatpush.msra.mxu0 0.0
    %587 = vmatpush.msra.mxu0 0.0
    %588 = vmatpush.msra.mxu0 0.0
    %589 = vmatpush.msra.mxu0 0.0
    %590 = vmatpush.msra.mxu0 0.0
    %591 = vmatpush.msra.mxu0 0.0
    %592 = vmatpush.msra.mxu0 0.0
    %593 = vmatpush.msra.mxu0 0.0
    %594 = vmatpush.msra.mxu0 0.0
    %v595 = vand.u32 %v502, 4294901760
    %596 = vmatpush.msra.mxu0 %v595
    %v597 = vand.u32 %v498, 4294901760
    %v598 = vsub.f32 %v498, %v597
    %v599 = vand.u32 %v598, 4294901760
    %600 = vmatmul.f32.gmra.mxu0 %v599
    %v601 = vpop.f32.mrf.mxu0
    %v602 = vadd.f32 %v578, %v601
    %603 = vdwg.mxu0
    %604 = vmatpush.msra.mxu0 0.0
    %605 = vmatpush.msra.mxu0 0.0
    %606 = vmatpush.msra.mxu0 0.0
    %607 = vmatpush.msra.mxu0 0.0
    %608 = vmatpush.msra.mxu0 0.0
    %609 = vmatpush.msra.mxu0 0.0
    %610 = vmatpush.msra.mxu0 0.0
    %611 = vmatpush.msra.mxu0 0.0
    %612 = vmatpush.msra.mxu0 0.0
    %613 = vmatpush.msra.mxu0 0.0
    %614 = vmatpush.msra.mxu0 0.0
    %615 = vmatpush.msra.mxu0 0.0
    %616 = vmatpush.msra.mxu0 0.0
    %617 = vmatpush.msra.mxu0 0.0
    %618 = vmatpush.msra.mxu0 0.0
    %v619 = vand.u32 %v502, 4294901760
    %v620 = vsub.f32 %v502, %v619
    %v621 = vand.u32 %v620, 4294901760
    %622 = vmatpush.msra.mxu0 %v621
    %v623 = vand.u32 %v498, 4294901760
    %624 = vmatmul.f32.gmra.mxu0 %v623
    %v625 = vpop.f32.mrf.mxu0
    %v626 = vadd.f32 %v602, %v625
    %627 = vdwg.mxu0
    %628 = vmatpush.msra.mxu0 0.0
    %629 = vmatpush.msra.mxu0 0.0
    %630 = vmatpush.msra.mxu0 0.0
    %631 = vmatpush.msra.mxu0 0.0
    %632 = vmatpush.msra.mxu0 0.0
    %633 = vmatpush.msra.mxu0 0.0
    %634 = vmatpush.msra.mxu0 0.0
    %635 = vmatpush.msra.mxu0 0.0
    %636 = vmatpush.msra.mxu0 0.0
    %637 = vmatpush.msra.mxu0 0.0
    %638 = vmatpush.msra.mxu0 0.0
    %639 = vmatpush.msra.mxu0 0.0
    %640 = vmatpush.msra.mxu0 0.0
    %641 = vmatpush.msra.mxu0 0.0
    %642 = vmatpush.msra.mxu0 0.0
    %v643 = vand.u32 %v502, 4294901760
    %644 = vmatpush.msra.mxu0 %v643
    %v645 = vand.u32 %v498, 4294901760
    %646 = vmatmul.f32.gmra.mxu0 %v645
    %v647 = vpop.f32.mrf.mxu0
    %v648 = vadd.f32 %v626, %v647
    %649 = vdwg.mxu0
    %v650 = vsub.f32 %v43, %v648
    %v651 = vmul.f32 %v650, %v650
    %v652 = vand.u32 %v145, 4294901760
    %653 = vmatpush.msra.mxu0 %v652
    %v654 = vand.u32 %v144, 4294901760
    %655 = vmatpush.msra.mxu0 %v654
    %v656 = vand.u32 %v143, 4294901760
    %657 = vmatpush.msra.mxu0 %v656
    %v658 = vand.u32 %v142, 4294901760
    %659 = vmatpush.msra.mxu0 %v658
    %v660 = vand.u32 %v141, 4294901760
    %661 = vmatpush.msra.mxu0 %v660
    %v662 = vand.u32 %v140, 4294901760
    %663 = vmatpush.msra.mxu0 %v662
    %v664 = vand.u32 %v139, 4294901760
    %665 = vmatpush.msra.mxu0 %v664
    %v666 = vand.u32 %v138, 4294901760
    %667 = vmatpush.msra.mxu0 %v666
    %v668 = vand.u32 %v137, 4294901760
    %669 = vmatpush.msra.mxu0 %v668
    %v670 = vand.u32 %v136, 4294901760
    %671 = vmatpush.msra.mxu0 %v670
    %v672 = vand.u32 %v135, 4294901760
    %673 = vmatpush.msra.mxu0 %v672
    %v674 = vand.u32 %v134, 4294901760
    %675 = vmatpush.msra.mxu0 %v674
    %v676 = vand.u32 %v133, 4294901760
    %677 = vmatpush.msra.mxu0 %v676
    %v678 = vand.u32 %v132, 4294901760
    %679 = vmatpush.msra.mxu0 %v678
    %v680 = vand.u32 %v131, 4294901760
    %681 = vmatpush.msra.mxu0 %v680
    %v682 = vand.u32 %v130, 4294901760
    %683 = vmatpush.msra.mxu0 %v682
    %v684 = vand.u32 %v651, 4294901760
    %v685 = vsub.f32 %v651, %v684
    %v686 = vand.u32 %v685, 4294901760
    %v687 = vsub.f32 %v685, %v686
    %v688 = vand.u32 %v687, 4294901760
    %689 = vmatmul.f32.gmra.mxu0 %v688
    %v690 = vpop.f32.mrf.mxu0
    %v691 = vadd.f32 0.0, %v690
    %692 = vdwg.mxu0
    %v693 = vand.u32 %v145, 4294901760
    %v694 = vsub.f32 %v145, %v693
    %v695 = vand.u32 %v694, 4294901760
    %v696 = vsub.f32 %v694, %v695
    %v697 = vand.u32 %v696, 4294901760
    %698 = vmatpush.msra.mxu0 %v697
    %v699 = vand.u32 %v144, 4294901760
    %v700 = vsub.f32 %v144, %v699
    %v701 = vand.u32 %v700, 4294901760
    %v702 = vsub.f32 %v700, %v701
    %v703 = vand.u32 %v702, 4294901760
    %704 = vmatpush.msra.mxu0 %v703
    %v705 = vand.u32 %v143, 4294901760
    %v706 = vsub.f32 %v143, %v705
    %v707 = vand.u32 %v706, 4294901760
    %v708 = vsub.f32 %v706, %v707
    %v709 = vand.u32 %v708, 4294901760
    %710 = vmatpush.msra.mxu0 %v709
    %v711 = vand.u32 %v142, 4294901760
    %v712 = vsub.f32 %v142, %v711
    %v713 = vand.u32 %v712, 4294901760
    %v714 = vsub.f32 %v712, %v713
    %v715 = vand.u32 %v714, 4294901760
    %716 = vmatpush.msra.mxu0 %v715
    %v717 = vand.u32 %v141, 4294901760
    %v718 = vsub.f32 %v141, %v717
    %v719 = vand.u32 %v718, 4294901760
    %v720 = vsub.f32 %v718, %v719
    %v721 = vand.u32 %v720, 4294901760
    %722 = vmatpush.msra.mxu0 %v721
    %v723 = vand.u32 %v140, 4294901760
    %v724 = vsub.f32 %v140, %v723
    %v725 = vand.u32 %v724, 4294901760
    %v726 = vsub.f32 %v724, %v725
    %v727 = vand.u32 %v726, 4294901760
    %728 = vmatpush.msra.mxu0 %v727
    %v729 = vand.u32 %v139, 4294901760
    %v730 = vsub.f32 %v139, %v729
    %v731 = vand.u32 %v730, 4294901760
    %v732 = vsub.f32 %v730, %v731
    %v733 = vand.u32 %v732, 4294901760
    %734 = vmatpush.msra.mxu0 %v733
    %v735 = vand.u32 %v138, 4294901760
    %v736 = vsub.f32 %v138, %v735
    %v737 = vand.u32 %v736, 4294901760
    %v738 = vsub.f32 %v736, %v737
    %v739 = vand.u32 %v738, 4294901760
    %740 = vmatpush.msra.mxu0 %v739
    %v741 = vand.u32 %v137, 4294901760
    %v742 = vsub.f32 %v137, %v741
    %v743 = vand.u32 %v742, 4294901760
    %v744 = vsub.f32 %v742, %v743
    %v745 = vand.u32 %v744, 4294901760
    %746 = vmatpush.msra.mxu0 %v745
    %v747 = vand.u32 %v136, 4294901760
    %v748 = vsub.f32 %v136, %v747
    %v749 = vand.u32 %v748, 4294901760
    %v750 = vsub.f32 %v748, %v749
    %v751 = vand.u32 %v750, 4294901760
    %752 = vmatpush.msra.mxu0 %v751
    %v753 = vand.u32 %v135, 4294901760
    %v754 = vsub.f32 %v135, %v753
    %v755 = vand.u32 %v754, 4294901760
    %v756 = vsub.f32 %v754, %v755
    %v757 = vand.u32 %v756, 4294901760
    %758 = vmatpush.msra.mxu0 %v757
    %v759 = vand.u32 %v134, 4294901760
    %v760 = vsub.f32 %v134, %v759
    %v761 = vand.u32 %v760, 4294901760
    %v762 = vsub.f32 %v760, %v761
    %v763 = vand.u32 %v762, 4294901760
    %764 = vmatpush.msra.mxu0 %v763
    %v765 = vand.u32 %v133, 4294901760
    %v766 = vsub.f32 %v133, %v765
    %v767 = vand.u32 %v766, 4294901760
    %v768 = vsub.f32 %v766, %v767
    %v769 = vand.u32 %v768, 4294901760
    %770 = vmatpush.msra.mxu0 %v769
    %v771 = vand.u32 %v132, 4294901760
    %v772 = vsub.f32 %v132, %v771
    %v773 = vand.u32 %v772, 4294901760
    %v774 = vsub.f32 %v772, %v773
    %v775 = vand.u32 %v774, 4294901760
    %776 = vmatpush.msra.mxu0 %v775
    %v777 = vand.u32 %v131, 4294901760
    %v778 = vsub.f32 %v131, %v777
    %v779 = vand.u32 %v778, 4294901760
    %v780 = vsub.f32 %v778, %v779
    %v781 = vand.u32 %v780, 4294901760
    %782 = vmatpush.msra.mxu0 %v781
    %v783 = vand.u32 %v130, 4294901760
    %v784 = vsub.f32 %v130, %v783
    %v785 = vand.u32 %v784, 4294901760
    %v786 = vsub.f32 %v784, %v785
    %v787 = vand.u32 %v786, 4294901760
    %788 = vmatpush.msra.mxu0 %v787
    %v789 = vand.u32 %v651, 4294901760
    %790 = vmatmul.f32.gmra.mxu0 %v789
    %v791 = vpop.f32.mrf.mxu0
    %v792 = vadd.f32 %v691, %v791
    %793 = vdwg.mxu0
    %v794 = vand.u32 %v145, 4294901760
    %v795 = vsub.f32 %v145, %v794
    %796 = vmatpush.msra.mxu0 %v795
    %v797 = vand.u32 %v144, 4294901760
    %v798 = vsub.f32 %v144, %v797
    %799 = vmatpush.msra.mxu0 %v798
    %v800 = vand.u32 %v143, 4294901760
    %v801 = vsub.f32 %v143, %v800
    %802 = vmatpush.msra.mxu0 %v801
    %v803 = vand.u32 %v142, 4294901760
    %v804 = vsub.f32 %v142, %v803
    %805 = vmatpush.msra.mxu0 %v804
    %v806 = vand.u32 %v141, 4294901760
    %v807 = vsub.f32 %v141, %v806
    %808 = vmatpush.msra.mxu0 %v807
    %v809 = vand.u32 %v140, 4294901760
    %v810 = vsub.f32 %v140, %v809
    %811 = vmatpush.msra.mxu0 %v810
    %v812 = vand.u32 %v139, 4294901760
    %v813 = vsub.f32 %v139, %v812
    %814 = vmatpush.msra.mxu0 %v813
    %v815 = vand.u32 %v138, 4294901760
    %v816 = vsub.f32 %v138, %v815
    %817 = vmatpush.msra.mxu0 %v816
    %v818 = vand.u32 %v137, 4294901760
    %v819 = vsub.f32 %v137, %v818
    %820 = vmatpush.msra.mxu0 %v819
    %v821 = vand.u32 %v136, 4294901760
    %v822 = vsub.f32 %v136, %v821
    %823 = vmatpush.msra.mxu0 %v822
    %v824 = vand.u32 %v135, 4294901760
    %v825 = vsub.f32 %v135, %v824
    %826 = vmatpush.msra.mxu0 %v825
    %v827 = vand.u32 %v134, 4294901760
    %v828 = vsub.f32 %v134, %v827
    %829 = vmatpush.msra.mxu0 %v828
    %v830 = vand.u32 %v133, 4294901760
    %v831 = vsub.f32 %v133, %v830
    %832 = vmatpush.msra.mxu0 %v831
    %v833 = vand.u32 %v132, 4294901760
    %v834 = vsub.f32 %v132, %v833
    %835 = vmatpush.msra.mxu0 %v834
    %v836 = vand.u32 %v131, 4294901760
    %v837 = vsub.f32 %v131, %v836
    %838 = vmatpush.msra.mxu0 %v837
    %v839 = vand.u32 %v130, 4294901760
    %v840 = vsub.f32 %v130, %v839
    %841 = vmatpush.msra.mxu0 %v840
    %v842 = vand.u32 %v651, 4294901760
    %v843 = vsub.f32 %v651, %v842
    %844 = vmatmul.f32.gmra.mxu0 %v843
    %v845 = vpop.f32.mrf.mxu0
    %v846 = vadd.f32 %v792, %v845
    %847 = vdwg.mxu0
    %v848 = vand.u32 %v145, 4294901760
    %849 = vmatpush.msra.mxu0 %v848
    %v850 = vand.u32 %v144, 4294901760
    %851 = vmatpush.msra.mxu0 %v850
    %v852 = vand.u32 %v143, 4294901760
    %853 = vmatpush.msra.mxu0 %v852
    %v854 = vand.u32 %v142, 4294901760
    %855 = vmatpush.msra.mxu0 %v854
    %v856 = vand.u32 %v141, 4294901760
    %857 = vmatpush.msra.mxu0 %v856
    %v858 = vand.u32 %v140, 4294901760
    %859 = vmatpush.msra.mxu0 %v858
    %v860 = vand.u32 %v139, 4294901760
    %861 = vmatpush.msra.mxu0 %v860
    %v862 = vand.u32 %v138, 4294901760
    %863 = vmatpush.msra.mxu0 %v862
    %v864 = vand.u32 %v137, 4294901760
    %865 = vmatpush.msra.mxu0 %v864
    %v866 = vand.u32 %v136, 4294901760
    %867 = vmatpush.msra.mxu0 %v866
    %v868 = vand.u32 %v135, 4294901760
    %869 = vmatpush.msra.mxu0 %v868
    %v870 = vand.u32 %v134, 4294901760
    %871 = vmatpush.msra.mxu0 %v870
    %v872 = vand.u32 %v133, 4294901760
    %873 = vmatpush.msra.mxu0 %v872
    %v874 = vand.u32 %v132, 4294901760
    %875 = vmatpush.msra.mxu0 %v874
    %v876 = vand.u32 %v131, 4294901760
    %877 = vmatpush.msra.mxu0 %v876
    %v878 = vand.u32 %v130, 4294901760
    %879 = vmatpush.msra.mxu0 %v878
    %v880 = vand.u32 %v651, 4294901760
    %v881 = vsub.f32 %v651, %v880
    %v882 = vand.u32 %v881, 4294901760
    %883 = vmatmul.f32.gmra.mxu0 %v882
    %v884 = vpop.f32.mrf.mxu0
    %v885 = vadd.f32 %v846, %v884
    %886 = vdwg.mxu0
    %v887 = vand.u32 %v145, 4294901760
    %v888 = vsub.f32 %v145, %v887
    %v889 = vand.u32 %v888, 4294901760
    %890 = vmatpush.msra.mxu0 %v889
    %v891 = vand.u32 %v144, 4294901760
    %v892 = vsub.f32 %v144, %v891
    %v893 = vand.u32 %v892, 4294901760
    %894 = vmatpush.msra.mxu0 %v893
    %v895 = vand.u32 %v143, 4294901760
    %v896 = vsub.f32 %v143, %v895
    %v897 = vand.u32 %v896, 4294901760
    %898 = vmatpush.msra.mxu0 %v897
    %v899 = vand.u32 %v142, 4294901760
    %v900 = vsub.f32 %v142, %v899
    %v901 = vand.u32 %v900, 4294901760
    %902 = vmatpush.msra.mxu0 %v901
    %v903 = vand.u32 %v141, 4294901760
    %v904 = vsub.f32 %v141, %v903
    %v905 = vand.u32 %v904, 4294901760
    %906 = vmatpush.msra.mxu0 %v905
    %v907 = vand.u32 %v140, 4294901760
    %v908 = vsub.f32 %v140, %v907
    %v909 = vand.u32 %v908, 4294901760
    %910 = vmatpush.msra.mxu0 %v909
    %v911 = vand.u32 %v139, 4294901760
    %v912 = vsub.f32 %v139, %v911
    %v913 = vand.u32 %v912, 4294901760
    %914 = vmatpush.msra.mxu0 %v913
    %v915 = vand.u32 %v138, 4294901760
    %v916 = vsub.f32 %v138, %v915
    %v917 = vand.u32 %v916, 4294901760
    %918 = vmatpush.msra.mxu0 %v917
    %v919 = vand.u32 %v137, 4294901760
    %v920 = vsub.f32 %v137, %v919
    %v921 = vand.u32 %v920, 4294901760
    %922 = vmatpush.msra.mxu0 %v921
    %v923 = vand.u32 %v136, 4294901760
    %v924 = vsub.f32 %v136, %v923
    %v925 = vand.u32 %v924, 4294901760
    %926 = vmatpush.msra.mxu0 %v925
    %v927 = vand.u32 %v135, 4294901760
    %v928 = vsub.f32 %v135, %v927
    %v929 = vand.u32 %v928, 4294901760
    %930 = vmatpush.msra.mxu0 %v929
    %v931 = vand.u32 %v134, 4294901760
    %v932 = vsub.f32 %v134, %v931
    %v933 = vand.u32 %v932, 4294901760
    %934 = vmatpush.msra.mxu0 %v933
    %v935 = vand.u32 %v133, 4294901760
    %v936 = vsub.f32 %v133, %v935
    %v937 = vand.u32 %v936, 4294901760
    %938 = vmatpush.msra.mxu0 %v937
    %v939 = vand.u32 %v132, 4294901760
    %v940 = vsub.f32 %v132, %v939
    %v941 = vand.u32 %v940, 4294901760
    %942 = vmatpush.msra.mxu0 %v941
    %v943 = vand.u32 %v131, 4294901760
    %v944 = vsub.f32 %v131, %v943
    %v945 = vand.u32 %v944, 4294901760
    %946 = vmatpush.msra.mxu0 %v945
    %v947 = vand.u32 %v130, 4294901760
    %v948 = vsub.f32 %v130, %v947
    %v949 = vand.u32 %v948, 4294901760
    %950 = vmatpush.msra.mxu0 %v949
    %v951 = vand.u32 %v651, 4294901760
    %952 = vmatmul.f32.gmra.mxu0 %v951
    %v953 = vpop.f32.mrf.mxu0
    %v954 = vadd.f32 %v885, %v953
    %955 = vdwg.mxu0
    %v956 = vand.u32 %v145, 4294901760
    %957 = vmatpush.msra.mxu0 %v956
    %v958 = vand.u32 %v144, 4294901760
    %959 = vmatpush.msra.mxu0 %v958
    %v960 = vand.u32 %v143, 4294901760
    %961 = vmatpush.msra.mxu0 %v960
    %v962 = vand.u32 %v142, 4294901760
    %963 = vmatpush.msra.mxu0 %v962
    %v964 = vand.u32 %v141, 4294901760
    %965 = vmatpush.msra.mxu0 %v964
    %v966 = vand.u32 %v140, 4294901760
    %967 = vmatpush.msra.mxu0 %v966
    %v968 = vand.u32 %v139, 4294901760
    %969 = vmatpush.msra.mxu0 %v968
    %v970 = vand.u32 %v138, 4294901760
    %971 = vmatpush.msra.mxu0 %v970
    %v972 = vand.u32 %v137, 4294901760
    %973 = vmatpush.msra.mxu0 %v972
    %v974 = vand.u32 %v136, 4294901760
    %975 = vmatpush.msra.mxu0 %v974
    %v976 = vand.u32 %v135, 4294901760
    %977 = vmatpush.msra.mxu0 %v976
    %v978 = vand.u32 %v134, 4294901760
    %979 = vmatpush.msra.mxu0 %v978
    %v980 = vand.u32 %v133, 4294901760
    %981 = vmatpush.msra.mxu0 %v980
    %v982 = vand.u32 %v132, 4294901760
    %983 = vmatpush.msra.mxu0 %v982
    %v984 = vand.u32 %v131, 4294901760
    %985 = vmatpush.msra.mxu0 %v984
    %v986 = vand.u32 %v130, 4294901760
    %987 = vmatpush.msra.mxu0 %v986
    %v988 = vand.u32 %v651, 4294901760
    %989 = vmatmul.f32.gmra.mxu0 %v988
    %v990 = vpop.f32.mrf.mxu0
    %v991 = vadd.f32 %v954, %v990
    %992 = vdwg.mxu0
    %v993 = vmul.f32 %v991, 0.032258064
    %v994 = vmax.f32 %v993, 0.0
    %v995 = vrsqrt.pop %v994
    %v996 = vmul.f32 %v995, %v994
    %v997 = vmul.f32 %v996, %v995
    %v998 = vmul.f32 0.5, %v997
    %v999 = vsub.f32 1.5, %v998
    %v1000 = vmul.f32 %v995, %v999
    %v1001 = vmul.f32 %v994, %v1000
    %vm1002 = vcmp.eq.f32.partialorder %v994, inf
    %v1003 = vsel %vm1002, %v994, %v1001
    %vm1004 = vcmp.eq.f32.partialorder %v994, 0.0
    %v1005 = vand.u32 %v994, 2147483648
    %v1006 = vsel %vm1004, %v1005, %v1003
    %v1007 = vadd.f32 %v1006, 1e-06
    %v1008 = vrcp.pop %v1007
    %v1009 = vmul.f32 %v1007, %v1008
    %v1010 = vsub.f32 2.0, %v1009
    %v1011 = vmul.f32 %v1008, %v1010
    %v1013 = vsel %vm496, %v1011, 0
    %1015 = vmatpush.msra.mxu0 0.0
    %1016 = vmatpush.msra.mxu0 0.0
    %1017 = vmatpush.msra.mxu0 0.0
    %1018 = vmatpush.msra.mxu0 0.0
    %1019 = vmatpush.msra.mxu0 0.0
    %1020 = vmatpush.msra.mxu0 0.0
    %1021 = vmatpush.msra.mxu0 0.0
    %1022 = vmatpush.msra.mxu0 0.0
    %1023 = vmatpush.msra.mxu0 0.0
    %1024 = vmatpush.msra.mxu0 0.0
    %1025 = vmatpush.msra.mxu0 0.0
    %1026 = vmatpush.msra.mxu0 0.0
    %1027 = vmatpush.msra.mxu0 0.0
    %1028 = vmatpush.msra.mxu0 0.0
    %1029 = vmatpush.msra.mxu0 0.0
    %v1030 = vand.u32 %v502, 4294901760
    %1031 = vmatpush.msra.mxu0 %v1030
    %v1032 = vand.u32 %v1013, 4294901760
    %v1033 = vsub.f32 %v1013, %v1032
    %v1034 = vand.u32 %v1033, 4294901760
    %v1035 = vsub.f32 %v1033, %v1034
    %v1036 = vand.u32 %v1035, 4294901760
    %1037 = vmatmul.f32.gmra.mxu0 %v1036
    %v1038 = vpop.f32.mrf.mxu0
    %v1039 = vadd.f32 0.0, %v1038
    %1040 = vdwg.mxu0
    %1041 = vmatpush.msra.mxu0 0.0
    %1042 = vmatpush.msra.mxu0 0.0
    %1043 = vmatpush.msra.mxu0 0.0
    %1044 = vmatpush.msra.mxu0 0.0
    %1045 = vmatpush.msra.mxu0 0.0
    %1046 = vmatpush.msra.mxu0 0.0
    %1047 = vmatpush.msra.mxu0 0.0
    %1048 = vmatpush.msra.mxu0 0.0
    %1049 = vmatpush.msra.mxu0 0.0
    %1050 = vmatpush.msra.mxu0 0.0
    %1051 = vmatpush.msra.mxu0 0.0
    %1052 = vmatpush.msra.mxu0 0.0
    %1053 = vmatpush.msra.mxu0 0.0
    %1054 = vmatpush.msra.mxu0 0.0
    %1055 = vmatpush.msra.mxu0 0.0
    %v1056 = vand.u32 %v502, 4294901760
    %v1057 = vsub.f32 %v502, %v1056
    %v1058 = vand.u32 %v1057, 4294901760
    %v1059 = vsub.f32 %v1057, %v1058
    %v1060 = vand.u32 %v1059, 4294901760
    %1061 = vmatpush.msra.mxu0 %v1060
    %v1062 = vand.u32 %v1013, 4294901760
    %1063 = vmatmul.f32.gmra.mxu0 %v1062
    %v1064 = vpop.f32.mrf.mxu0
    %v1065 = vadd.f32 %v1039, %v1064
    %1066 = vdwg.mxu0
    %1067 = vmatpush.msra.mxu0 0.0
    %1068 = vmatpush.msra.mxu0 0.0
    %1069 = vmatpush.msra.mxu0 0.0
    %1070 = vmatpush.msra.mxu0 0.0
    %1071 = vmatpush.msra.mxu0 0.0
    %1072 = vmatpush.msra.mxu0 0.0
    %1073 = vmatpush.msra.mxu0 0.0
    %1074 = vmatpush.msra.mxu0 0.0
    %1075 = vmatpush.msra.mxu0 0.0
    %1076 = vmatpush.msra.mxu0 0.0
    %1077 = vmatpush.msra.mxu0 0.0
    %1078 = vmatpush.msra.mxu0 0.0
    %1079 = vmatpush.msra.mxu0 0.0
    %1080 = vmatpush.msra.mxu0 0.0
    %1081 = vmatpush.msra.mxu0 0.0
    %v1082 = vand.u32 %v502, 4294901760
    %v1083 = vsub.f32 %v502, %v1082
    %1084 = vmatpush.msra.mxu0 %v1083
    %v1085 = vand.u32 %v1013, 4294901760
    %v1086 = vsub.f32 %v1013, %v1085
    %1087 = vmatmul.f32.gmra.mxu0 %v1086
    %v1088 = vpop.f32.mrf.mxu0
    %v1089 = vadd.f32 %v1065, %v1088
    %1090 = vdwg.mxu0
    %1091 = vmatpush.msra.mxu0 0.0
    %1092 = vmatpush.msra.mxu0 0.0
    %1093 = vmatpush.msra.mxu0 0.0
    %1094 = vmatpush.msra.mxu0 0.0
    %1095 = vmatpush.msra.mxu0 0.0
    %1096 = vmatpush.msra.mxu0 0.0
    %1097 = vmatpush.msra.mxu0 0.0
    %1098 = vmatpush.msra.mxu0 0.0
    %1099 = vmatpush.msra.mxu0 0.0
    %1100 = vmatpush.msra.mxu0 0.0
    %1101 = vmatpush.msra.mxu0 0.0
    %1102 = vmatpush.msra.mxu0 0.0
    %1103 = vmatpush.msra.mxu0 0.0
    %1104 = vmatpush.msra.mxu0 0.0
    %1105 = vmatpush.msra.mxu0 0.0
    %v1106 = vand.u32 %v502, 4294901760
    %1107 = vmatpush.msra.mxu0 %v1106
    %v1108 = vand.u32 %v1013, 4294901760
    %v1109 = vsub.f32 %v1013, %v1108
    %v1110 = vand.u32 %v1109, 4294901760
    %1111 = vmatmul.f32.gmra.mxu0 %v1110
    %v1112 = vpop.f32.mrf.mxu0
    %v1113 = vadd.f32 %v1089, %v1112
    %1114 = vdwg.mxu0
    %1115 = vmatpush.msra.mxu0 0.0
    %1116 = vmatpush.msra.mxu0 0.0
    %1117 = vmatpush.msra.mxu0 0.0
    %1118 = vmatpush.msra.mxu0 0.0
    %1119 = vmatpush.msra.mxu0 0.0
    %1120 = vmatpush.msra.mxu0 0.0
    %1121 = vmatpush.msra.mxu0 0.0
    %1122 = vmatpush.msra.mxu0 0.0
    %1123 = vmatpush.msra.mxu0 0.0
    %1124 = vmatpush.msra.mxu0 0.0
    %1125 = vmatpush.msra.mxu0 0.0
    %1126 = vmatpush.msra.mxu0 0.0
    %1127 = vmatpush.msra.mxu0 0.0
    %1128 = vmatpush.msra.mxu0 0.0
    %1129 = vmatpush.msra.mxu0 0.0
    %v1130 = vand.u32 %v502, 4294901760
    %v1131 = vsub.f32 %v502, %v1130
    %v1132 = vand.u32 %v1131, 4294901760
    %1133 = vmatpush.msra.mxu0 %v1132
    %v1134 = vand.u32 %v1013, 4294901760
    %1135 = vmatmul.f32.gmra.mxu0 %v1134
    %v1136 = vpop.f32.mrf.mxu0
    %v1137 = vadd.f32 %v1113, %v1136
    %1138 = vdwg.mxu0
    %1139 = vmatpush.msra.mxu0 0.0
    %1140 = vmatpush.msra.mxu0 0.0
    %1141 = vmatpush.msra.mxu0 0.0
    %1142 = vmatpush.msra.mxu0 0.0
    %1143 = vmatpush.msra.mxu0 0.0
    %1144 = vmatpush.msra.mxu0 0.0
    %1145 = vmatpush.msra.mxu0 0.0
    %1146 = vmatpush.msra.mxu0 0.0
    %1147 = vmatpush.msra.mxu0 0.0
    %1148 = vmatpush.msra.mxu0 0.0
    %1149 = vmatpush.msra.mxu0 0.0
    %1150 = vmatpush.msra.mxu0 0.0
    %1151 = vmatpush.msra.mxu0 0.0
    %1152 = vmatpush.msra.mxu0 0.0
    %1153 = vmatpush.msra.mxu0 0.0
    %v1154 = vand.u32 %v502, 4294901760
    %1155 = vmatpush.msra.mxu0 %v1154
    %v1156 = vand.u32 %v1013, 4294901760
    %1157 = vmatmul.f32.gmra.mxu0 %v1156
    %v1158 = vpop.f32.mrf.mxu0
    %v1159 = vadd.f32 %v1137, %v1158
    %1160 = vdwg.mxu0
    %v1161 = vmul.f32 %v650, %v1159
    %v1162 = vld [vmem:[#allocation5] sm:$0x1]
    %v1164 = vperm.slane %v1162, 0
    %v1166 = vmul.f32 %v1161, %v1164
    %v1167 = vld [vmem:[%s2] sm:$0x1]
    %v1169 = vperm.slane %v1167, 0
    %v1171 = vadd.f32 %v1166, %v1169
    %1172 = vst [vmem:[#allocation7] sm:$0xf] %v1171
    // Predicated region
    $region22: #{tpu_custom_call.1} parent=1 // pred_check
      _
    $region23: #{tpu_custom_call.1} parent=1 // pred_check_branch
      %1174 = sbr.rel (0) target = $region25
    $region24: #{tpu_custom_call.1} parent=1 // pred_region
      %1176 = vsyncadd [#allocation4], 0
      %s1178 = sshll.u32 [#allocation7], 4
      %s1179 = int_to_ptr.vmem [resolvable:$true] %s1178
      %s1180 = sshll.u32 %s3, 4
      %s1181 = int_to_ptr.hbm [resolvable:$true] %s1180
      %1183 = dma.vmem_to_hbm [thread:$0]  %s1179, 64, %s1181, [#allocation4]
    $region25: #{tpu_custom_call.1} parent=1 // pred_fallthru
      _
    // Predicated region
    $region26: #{tpu_custom_call.1} parent=1 // pred_check
      _
    $region27: #{tpu_custom_call.1} parent=1 // pred_check_branch
      %1185 = sbr.rel (0) target = $region29
    $region28: #{tpu_custom_call.1} parent=1 // pred_region
      %1187 = dma.done [#allocation4], 64
    $region29: #{tpu_custom_call.1} parent=1 // pred_fallthru
      _
    %1188 = vsyncpa [#allocation3], 1
    %1189 = vsyncpa [#allocation6], 1
    %1190 = vsyncpa [#allocation4], 1

</llo_original>
